<compile_context>
chip_gen: v7x
topology: tpu7x:2x2x1
jax: 0.10.0
libtpu: 0.0.40
codegen_flags: <defaults>
</compile_context>

<pallas_src>
import functools

import jax
import jax.numpy as jnp
from jax.experimental import pallas as pl
from jax.experimental.pallas import tpu as pltpu

LN_EPS = 1e-5   # PyTorch nn.LayerNorm default
LANE = 128      # TPU lane width


def _round_up(a, b):
    return ((a + b - 1) // b) * b


def _hash_func_kernel(x_ref, wt_ref, gamma_ref, beta_ref, o_ref, *, n_bits):
    # MXU matmul in native operand dtype, f32 accumulation: (tm, fc) @ (fc, n_pad).
    y = jnp.dot(x_ref[...], wt_ref[...], preferred_element_type=jnp.float32)

    inv_n = jnp.float32(1.0 / n_bits)
    # Columns >= n_bits of y are exactly zero (weight pad is zero), so sums over
    # the padded width equal the true sums; E[y^2] - mean^2 avoids the lane mask
    # and the extra elementwise pass over a centered copy.
    mean = jnp.sum(y, axis=-1, keepdims=True) * inv_n
    ex2 = jnp.sum(y * y, axis=-1, keepdims=True) * inv_n
    var = jnp.maximum(ex2 - mean * mean, 0.0)

    y_valid = y[:, :n_bits]                                   # (tm, n_bits)
    y_hat = (y_valid - mean) * jax.lax.rsqrt(var + LN_EPS)
    y_ln = y_hat * gamma_ref[...] + beta_ref[...]             # gamma/beta are f32

    o_ref[...] = jnp.tanh(y_ln).astype(o_ref.dtype)


def prepare_hash_params(w, gamma, beta, *, weight_dtype=None):
    """One-time conversion of PyTorch-layout params into kernel layout.

    w: (n_bits, fc_dim) Linear weight -> W_T zero-padded to (fc_dim, N_PAD),
       optionally cast to `weight_dtype` (e.g. bf16) for cheaper MXU operands.
    gamma/beta: (n_bits,) -> (1, n_bits), kept in f32 (LN math stays f32).
    """
    n_bits, fc_dim = w.shape
    n_pad = _round_up(max(n_bits, LANE), LANE)
    wdt = w.dtype if weight_dtype is None else weight_dtype

    w_t_pad = jnp.zeros((fc_dim, n_pad), wdt).at[:, :n_bits].set(w.T.astype(wdt))
    gamma2 = gamma.astype(jnp.float32).reshape(1, n_bits)
    beta2 = beta.astype(jnp.float32).reshape(1, n_bits)
    return w_t_pad, gamma2, beta2, n_bits


def _choose_tile_and_vmem(B, fc_dim, n_bits, n_pad, x_item, w_item, out_item):
    """Pick the batch tile tm and a tile-derived vmem_limit_bytes."""
    # Target ~2 MiB of X per grid step (>=1 MiB DMAs sit near HBM roofline).
    target_x_bytes = 2 * 1024 * 1024
    tm = target_x_bytes // max(1, fc_dim * x_item)
    tm = max(256, min(4096, tm))
    tm = min(tm, _round_up(B, 8))              # never larger than (rounded) batch
    if B >= 16:                                # v7x: keep >= 2 grid steps for 2 TCs
        tm = min(tm, _round_up(pl.cdiv(B, 2), 8))
    tm = max(8, _round_up(tm, 8))

    def vmem_bytes(t):
        return (2 * t * fc_dim * x_item        # X, double-buffered
                + 2 * fc_dim * n_pad * w_item  # W_T (conservative 2x)
                + 2 * t * n_bits * out_item    # out, double-buffered
                + 4 * t * n_pad                # f32 matmul result / LN temporaries
                + (2 << 20))                   # headroom

    try:
        phys_vmem = int(pltpu.get_tpu_info().vmem_capacity_bytes)
    except Exception:
        phys_vmem = 64 * 1024 * 1024           # v7x-safe fallback
    cap = (phys_vmem * 3) // 4                 # 48 MiB on v7x, 96 MiB on v5e/v6e

    while tm > 8 and vmem_bytes(tm) > cap:
        tm = max(8, _round_up(tm // 2, 8))

    vmem_limit = int(min(max(vmem_bytes(tm), 16 * 1024 * 1024), cap))
    return tm, vmem_limit


def hash_func_forward(x, w_t_pad, gamma, beta, n_bits):
    """x: (B, fc_dim); params from prepare_hash_params. Returns (B, n_bits)."""
    B, fc_dim = x.shape
    n_pad = w_t_pad.shape[1]

    x_item = jnp.dtype(x.dtype).itemsize
    w_item = jnp.dtype(w_t_pad.dtype).itemsize
    out_dtype = x.dtype
    out_item = jnp.dtype(out_dtype).itemsize

    tm, vmem_limit = _choose_tile_and_vmem(B, fc_dim, n_bits, n_pad,
                                           x_item, w_item, out_item)
    grid = (pl.cdiv(B, tm),)
    kernel = functools.partial(_hash_func_kernel, n_bits=n_bits)

    cost = pl.CostEstimate(
        flops=2 * B * fc_dim * n_pad,
        transcendentals=B * (n_bits + 1),          # tanh + rsqrt
        bytes_accessed=(B * fc_dim * x_item
                        + w_t_pad.size * w_item
                        + B * n_bits * out_item),
    )

    return pl.pallas_call(
        kernel,
        out_shape=jax.ShapeDtypeStruct((B, n_bits), out_dtype),
        grid=grid,
        in_specs=[
            # X streams per batch tile (double-buffered by default).
            pl.BlockSpec((tm, fc_dim), lambda i: (i, 0)),
            # Grid-invariant operands: VMEM-resident, single-buffered.
            pl.BlockSpec((fc_dim, n_pad), lambda i: (0, 0),
                         pipeline_mode=pl.Buffered(1)),
            pl.BlockSpec((1, n_bits), lambda i: (0, 0),
                         pipeline_mode=pl.Buffered(1)),
            pl.BlockSpec((1, n_bits), lambda i: (0, 0),
                         pipeline_mode=pl.Buffered(1)),
        ],
        out_specs=pl.BlockSpec((tm, n_bits), lambda i: (i, 0)),
        compiler_params=pltpu.CompilerParams(
            dimension_semantics=("parallel",),
            vmem_limit_bytes=vmem_limit,
        ),
        cost_estimate=cost,
    )(x, w_t_pad, gamma, beta)


def init_params(key, fc_dim, n_bits, nb_cls):
    """Deterministic init mirroring the PyTorch module's parameter shapes."""
    k_w, k_p = jax.random.split(key)

    # nn.Linear default init: U(-1/sqrt(fan_in), 1/sqrt(fan_in)), shape (out, in).
    bound_w = 1.0 / jnp.sqrt(jnp.float32(fc_dim))
    w = jax.random.uniform(k_w, (n_bits, fc_dim), jnp.float32, -bound_w, bound_w)

    # nn.LayerNorm default: gamma = 1, beta = 0.
    gamma = jnp.ones((n_bits,), jnp.float32)
    beta = jnp.zeros((n_bits,), jnp.float32)

    # self.P: xavier_uniform_ with tanh gain (5/3); unused in forward().
    gain = 5.0 / 3.0
    bound_p = gain * jnp.sqrt(6.0 / jnp.float32(nb_cls + n_bits))
    p = jax.random.uniform(k_p, (nb_cls, n_bits), jnp.float32, -bound_p, bound_p)

    return w, gamma, beta, p


def reference_forward(x, w, gamma, beta):
    y = jnp.dot(x, w.T, precision=jax.lax.Precision.HIGHEST)
    mean = jnp.mean(y, axis=-1, keepdims=True)
    var = jnp.mean((y - mean) ** 2, axis=-1, keepdims=True)
    y_hat = (y - mean) * jax.lax.rsqrt(var + LN_EPS)
    return jnp.tanh(y_hat * gamma + beta)


if __name__ == "__main__":
    fc_dim, n_bits, nb_cls = 32, 16, 10
    batch = 8

    key = jax.random.PRNGKey(0)
    k_x, k_x2, k_params = jax.random.split(key, 3)

    w, gamma, beta, p_unused = init_params(k_params, fc_dim, n_bits, nb_cls)

    # ---- f32 path ------------------------------------------------------------
    w_t, g2, b2, nb = prepare_hash_params(w, gamma, beta)

    # Case 1: batch a multiple of 8.
    x = jax.random.normal(k_x, (batch, fc_dim), jnp.float32)
    out = jax.block_until_ready(hash_func_forward(x, w_t, g2, b2, nb))
    ref = reference_forward(x, w, gamma, beta)
    assert out.shape == (batch, n_bits)
    # Tolerance accommodates MXU f32 pass decomposition vs. the XLA reference.
    assert jnp.allclose(out, ref, atol=2e-3, rtol=2e-3)

    # Case 2: ragged batch (exercises cdiv grid + masked final block, no padding).
    x2 = jax.random.normal(k_x2, (batch + 3, fc_dim), jnp.float32)
    out2 = jax.block_until_ready(hash_func_forward(x2, w_t, g2, b2, nb))
    ref2 = reference_forward(x2, w, gamma, beta)
    assert out2.shape == (batch + 3, n_bits)
    assert jnp.allclose(out2, ref2, atol=2e-3, rtol=2e-3)

    # ---- bf16 MXU-operand path (halves HBM traffic for x and W_T) -------------
    w_t_bf, g2b, b2b, _ = prepare_hash_params(w, gamma, beta,
                                              weight_dtype=jnp.bfloat16)
    x_bf = x.astype(jnp.bfloat16)
    out3 = jax.block_until_ready(hash_func_forward(x_bf, w_t_bf, g2b, b2b, nb))
    ref3 = reference_forward(x_bf.astype(jnp.float32), w, gamma, beta)
    assert out3.shape == (batch, n_bits)
    assert jnp.allclose(out3.astype(jnp.float32), ref3, atol=5e-2)

    print("KERNEL_OK")
</pallas_src>

<mosaic_0001>
module attributes {stable_mosaic.version = 11 : i64} {
  func.func @_hash_func_kernel(%arg0: i32, %arg1: memref<8x32xf32, #tpu.memory_space<vmem>>, %arg2: memref<32x128xf32, #tpu.memory_space<vmem>>, %arg3: memref<1x16xf32, #tpu.memory_space<vmem>>, %arg4: memref<1x16xf32, #tpu.memory_space<vmem>>, %arg5: memref<8x16xf32, #tpu.memory_space<vmem>>) attributes {dimension_semantics = [#tpu.dimension_semantics<parallel>], iteration_bounds = array<i64: 1>, scalar_prefetch = 0 : i64, scratch_operands = 0 : i64, tpu.core_type = #tpu.core_type<tc>, window_params = [{transform_indices = @transform_0, window_bounds = array<i64: 8, 32>}, {pipeline_mode = #tpu.pipeline_mode<synchronous>, transform_indices = @transform_1, window_bounds = array<i64: 32, 128>}, {pipeline_mode = #tpu.pipeline_mode<synchronous>, transform_indices = @transform_2, window_bounds = array<i64: 1, 16>}, {pipeline_mode = #tpu.pipeline_mode<synchronous>, transform_indices = @transform_3, window_bounds = array<i64: 1, 16>}, {transform_indices = @transform_4, window_bounds = array<i64: 8, 16>}]} {
    %c0 = arith.constant 0 : index
    %c0_0 = arith.constant 0 : index
    %0 = vector.load %arg1[%c0, %c0_0] : memref<8x32xf32, #tpu.memory_space<vmem>>, vector<8x32xf32>
    %c0_1 = arith.constant 0 : index
    %c0_2 = arith.constant 0 : index
    %1 = vector.load %arg2[%c0_1, %c0_2] : memref<32x128xf32, #tpu.memory_space<vmem>>, vector<32x128xf32>
    %cst = arith.constant dense<0.000000e+00> : vector<8x128xf32>
    %2 = tpu.matmul %0, %1, %cst {dimension_numbers = #tpu.dot_dimension_numbers<[1], [0], [0], [1], [0, 0, 1, 1], [], []>} : vector<8x32xf32>, vector<32x128xf32>, vector<8x128xf32> -> vector<8x128xf32>
    %cst_3 = arith.constant dense<0.000000e+00> : vector<8xf32>
    %3 = vector.multi_reduction <add>, %2, %cst_3 [1] : vector<8x128xf32> to vector<8xf32>
    %4 = vector.shape_cast %3 : vector<8xf32> to vector<8x1xf32>
    %cst_4 = arith.constant 6.250000e-02 : f32
    %5 = vector.broadcast %cst_4 : f32 to vector<8x1xf32>
    %6 = arith.mulf %4, %5 : vector<8x1xf32>
    %7 = arith.mulf %2, %2 : vector<8x128xf32>
    %cst_5 = arith.constant dense<0.000000e+00> : vector<8xf32>
    %8 = vector.multi_reduction <add>, %7, %cst_5 [1] : vector<8x128xf32> to vector<8xf32>
    %9 = vector.shape_cast %8 : vector<8xf32> to vector<8x1xf32>
    %cst_6 = arith.constant 6.250000e-02 : f32
    %10 = vector.broadcast %cst_6 : f32 to vector<8x1xf32>
    %11 = arith.mulf %9, %10 : vector<8x1xf32>
    %12 = arith.mulf %6, %6 : vector<8x1xf32>
    %13 = arith.subf %11, %12 : vector<8x1xf32>
    %cst_7 = arith.constant 0.000000e+00 : f32
    %14 = vector.broadcast %cst_7 : f32 to vector<8x1xf32>
    %15 = arith.maximumf %13, %14 : vector<8x1xf32>
    %16 = vector.extract_strided_slice %2 {offsets = [0, 0], sizes = [8, 16], strides = [1, 1]} : vector<8x128xf32> to vector<8x16xf32>
    %17 = vector.broadcast %6 : vector<8x1xf32> to vector<8x16xf32>
    %18 = arith.subf %16, %17 : vector<8x16xf32>
    %cst_8 = arith.constant 9.99999974E-6 : f32
    %19 = vector.broadcast %cst_8 : f32 to vector<8x1xf32>
    %20 = arith.addf %15, %19 : vector<8x1xf32>
    %21 = math.rsqrt %20 : vector<8x1xf32>
    %22 = vector.broadcast %21 : vector<8x1xf32> to vector<8x16xf32>
    %23 = arith.mulf %18, %22 : vector<8x16xf32>
    %c0_9 = arith.constant 0 : index
    %c0_10 = arith.constant 0 : index
    %24 = vector.load %arg3[%c0_9, %c0_10] : memref<1x16xf32, #tpu.memory_space<vmem>>, vector<1x16xf32>
    %25 = vector.broadcast %24 : vector<1x16xf32> to vector<8x16xf32>
    %26 = arith.mulf %23, %25 : vector<8x16xf32>
    %c0_11 = arith.constant 0 : index
    %c0_12 = arith.constant 0 : index
    %27 = vector.load %arg4[%c0_11, %c0_12] : memref<1x16xf32, #tpu.memory_space<vmem>>, vector<1x16xf32>
    %28 = vector.broadcast %27 : vector<1x16xf32> to vector<8x16xf32>
    %29 = arith.addf %26, %28 : vector<8x16xf32>
    %30 = math.tanh %29 : vector<8x16xf32>
    %c0_13 = arith.constant 0 : index
    %c0_14 = arith.constant 0 : index
    %31 = vector.load %arg5[%c0_13, %c0_14] : memref<8x16xf32, #tpu.memory_space<vmem>>, vector<8x16xf32>
    tpu.vector_store %arg5[%c0_13, %c0_14], %30 {strides = array<i32>} : memref<8x16xf32, #tpu.memory_space<vmem>>, vector<8x16xf32>,
    return
  }
  func.func @transform_0(%arg0: i32) -> (i32, i32) {
    %c0_i32 = arith.constant 0 : i32
    %c0_i32_0 = arith.constant 0 : i32
    return %arg0, %c0_i32 : i32, i32
  }
  func.func @transform_1(%arg0: i32) -> (i32, i32) {
    %c0_i32 = arith.constant 0 : i32
    %c0_i32_0 = arith.constant 0 : i32
    %c0_i32_1 = arith.constant 0 : i32
    return %c0_i32, %c0_i32_0 : i32, i32
  }
  func.func @transform_2(%arg0: i32) -> (i32, i32) {
    %c0_i32 = arith.constant 0 : i32
    %c0_i32_0 = arith.constant 0 : i32
    %c0_i32_1 = arith.constant 0 : i32
    return %c0_i32, %c0_i32_0 : i32, i32
  }
  func.func @transform_3(%arg0: i32) -> (i32, i32) {
    %c0_i32 = arith.constant 0 : i32
    %c0_i32_0 = arith.constant 0 : i32
    %c0_i32_1 = arith.constant 0 : i32
    return %c0_i32, %c0_i32_0 : i32, i32
  }
  func.func @transform_4(%arg0: i32) -> (i32, i32) {
    %c0_i32 = arith.constant 0 : i32
    %c0_i32_0 = arith.constant 0 : i32
    return %arg0, %c0_i32 : i32, i32
  }
}

</mosaic_0001>

<llo_original>
// kernel: tpu_custom_call.1
$region0: #{tpu_custom_call.1}
  #allocation0 [shape = 'u32[]', space=smem, size = 0x4, offset = 0x4, fixed_abs, tag = 'smem constant byte address 0x4 - core index']
  #allocation1 [shape = 'u32[144,128]{1,0:T(1,128)}', space=vmem, size = 0x12000, scoped, tag = 'internal scratch']
  %s0 = inlined_call_operand.hbm [shape: f32[8,32], index: 0, kind: input, shape index: {}]
  %s1 = inlined_call_operand.hbm [shape: f32[32,128], index: 1, kind: input, shape index: {}]
  %s2 = inlined_call_operand.vmem [shape: f32[1,16], index: 2, kind: input, shape index: {}]
  %s3 = inlined_call_operand.vmem [shape: f32[1,16], index: 3, kind: input, shape index: {}]
  %s4 = inlined_call_operand.hbm [shape: f32[8,16], index: 4, kind: output, shape index: {}]
  %s5 = sld [smem:[#allocation0]]
  $region34: #{tpu_custom_call.1} parent=0
    _
  %s7 = ssub.s32 1, %s5
  %s8 = scalar_select 0, %s7, %s5
  $region1: #{tpu_custom_call.1} parent=0
    #allocation2 [shape = 'u8[4096]{0}', space=vmem, size = 0x1000, scoped, tag = 'input window, operand 0, single buffered']
    #allocation3 [shape = 's32[1]{0}', space=sflag, size = 0x4, scoped, tag = 'scoped memory for tpu_custom_call.1']
    #allocation4 [shape = 's32[1]{0}', space=sflag, size = 0x4, scoped, tag = 'scoped memory for tpu_custom_call.1']
    #allocation5 [shape = 'u8[16384]{0}', space=vmem, size = 0x4000, scoped, tag = 'input window, operand 1, single buffered']
    #allocation6 [shape = 's32[1]{0}', space=sflag, size = 0x4, scoped, tag = 'scoped memory for tpu_custom_call.1']
    #allocation7 [shape = 'u8[4096]{0}', space=vmem, size = 0x1000, scoped, tag = 'output window, operand 0, single buffered']
    %9 = vsyncpa [#allocation3], 0
    %10 = vsyncpa [#allocation6], 0
    %11 = vsyncpa [#allocation4], 0
    // Predicated region
    $region2: #{tpu_custom_call.1} parent=1 // pred_check
      _
    $region3: #{tpu_custom_call.1} parent=1 // pred_check_branch
      %13 = sbr.rel (0) target = $region5
    $region4: #{tpu_custom_call.1} parent=1 // pred_region
      %s15 = ssub.s32 128, 128
      %16 = vsyncadd [#allocation3], %s15
      %s18 = sshll.u32 [#allocation2], 4
      %s19 = int_to_ptr.vmem [resolvable:$true] %s18
      %21 = dma.hbm_to_vmem [thread:$0]  %s0, 128, %s19, [#allocation3]
    $region5: #{tpu_custom_call.1} parent=1 // pred_fallthru
      _
    // Predicated region
    $region6: #{tpu_custom_call.1} parent=1 // pred_check
      _
    $region7: #{tpu_custom_call.1} parent=1 // pred_check_branch
      %23 = sbr.rel (0) target = $region9
    $region8: #{tpu_custom_call.1} parent=1 // pred_region
      %s25 = ssub.s32 512, 512
      %26 = vsyncadd [#allocation6], %s25
      %s27 = sshll.u32 [#allocation5], 4
      %s28 = int_to_ptr.vmem [resolvable:$true] %s27
      %33 = dma.hbm_to_vmem [thread:$0]  %s1, 512, %s28, [#allocation6], 128, 128, 8
    $region9: #{tpu_custom_call.1} parent=1 // pred_fallthru
      _
    // Predicated region
    $region10: #{tpu_custom_call.1} parent=1 // pred_check
      _
    $region11: #{tpu_custom_call.1} parent=1 // pred_check_branch
      %35 = sbr.rel (0) target = $region13
    $region12: #{tpu_custom_call.1} parent=1 // pred_region
      _
    $region13: #{tpu_custom_call.1} parent=1 // pred_fallthru
      _
    // Predicated region
    $region14: #{tpu_custom_call.1} parent=1 // pred_check
      _
    $region15: #{tpu_custom_call.1} parent=1 // pred_check_branch
      %37 = sbr.rel (0) target = $region17
    $region16: #{tpu_custom_call.1} parent=1 // pred_region
      _
    $region17: #{tpu_custom_call.1} parent=1 // pred_fallthru
      _
    // Predicated region
    $region18: #{tpu_custom_call.1} parent=1 // pred_check
      _
    $region19: #{tpu_custom_call.1} parent=1 // pred_check_branch
      %39 = sbr.rel (0) target = $region21
    $region20: #{tpu_custom_call.1} parent=1 // pred_region
      %40 = dma.done [#allocation3], 128
    $region21: #{tpu_custom_call.1} parent=1 // pred_fallthru
      _
    // Predicated region
    $region22: #{tpu_custom_call.1} parent=1 // pred_check
      _
    $region23: #{tpu_custom_call.1} parent=1 // pred_check_branch
      %42 = sbr.rel (0) target = $region25
    $region24: #{tpu_custom_call.1} parent=1 // pred_region
      %43 = dma.done [#allocation6], 512
    $region25: #{tpu_custom_call.1} parent=1 // pred_fallthru
      _
    %v44 = vld [vmem:[#allocation2] sm:$0xff]
    %v45 = vld [vmem:[#allocation5] sm:$0xff]
    %v46 = vld [vmem:[#allocation5 + $0x8] sm:$0xff]
    %v47 = vld [vmem:[#allocation5 + $0x10] sm:$0xff]
    %v48 = vld [vmem:[#allocation5 + $0x18] sm:$0xff]
    %vm49 = vcmask 261120
    %v51 = vsel %vm49, %v44, 0
    %53 = vmatprep.subr.mxu0 0.0
    %54 = vmatpush1.msra.mxu0 %v45
    %55 = vmatprep.subr.mxu0 0.0
    %56 = vmatpush1.msra.mxu0 %v46
    %57 = vmatprep.subr.mxu0 0.0
    %58 = vmatpush1.msra.mxu0 %v47
    %59 = vmatprep.subr.mxu0 0.0
    %60 = vmatpush1.msra.mxu0 %v48
    %61 = vmatprep.subr.mxu0 0.0
    %62 = vmatpush1.msra.mxu0 0.0
    %63 = vmatprep.subr.mxu0 0.0
    %64 = vmatpush1.msra.mxu0 0.0
    %65 = vmatprep.subr.mxu0 0.0
    %66 = vmatpush1.msra.mxu0 0.0
    %67 = vmatprep.subr.mxu0 0.0
    %68 = vmatpush1.msra.mxu0 0.0
    %69 = vmatprep.subr.mxu0 0.0
    %70 = vmatpush1.msra.mxu0 0.0
    %71 = vmatprep.subr.mxu0 0.0
    %72 = vmatpush1.msra.mxu0 0.0
    %73 = vmatprep.subr.mxu0 0.0
    %74 = vmatpush1.msra.mxu0 0.0
    %75 = vmatprep.subr.mxu0 0.0
    %76 = vmatpush1.msra.mxu0 0.0
    %77 = vmatprep.subr.mxu0 0.0
    %78 = vmatpush1.msra.mxu0 0.0
    %79 = vmatprep.subr.mxu0 0.0
    %80 = vmatpush1.msra.mxu0 0.0
    %81 = vmatprep.subr.mxu0 0.0
    %82 = vmatpush1.msra.mxu0 0.0
    %83 = vmatprep.subr.mxu0 0.0
    %84 = vmatpush1.msra.mxu0 0.0
    %85 = vmatprep.subr.mxu0 0.0
    %86 = vmatpush1.msra.mxu0 0.0
    %87 = vmatprep.subr.mxu0 0.0
    %88 = vmatpush1.msra.mxu0 0.0
    %89 = vmatprep.subr.mxu0 0.0
    %90 = vmatpush1.msra.mxu0 0.0
    %91 = vmatprep.subr.mxu0 0.0
    %92 = vmatpush1.msra.mxu0 0.0
    %93 = vmatprep.subr.mxu0 0.0
    %94 = vmatpush1.msra.mxu0 0.0
    %95 = vmatprep.subr.mxu0 0.0
    %96 = vmatpush1.msra.mxu0 0.0
    %97 = vmatprep.subr.mxu0 0.0
    %98 = vmatpush1.msra.mxu0 0.0
    %99 = vmatprep.subr.mxu0 0.0
    %100 = vmatpush1.msra.mxu0 0.0
    %101 = vmatprep.subr.mxu0 0.0
    %102 = vmatpush1.msra.mxu0 0.0
    %103 = vmatprep.subr.mxu0 0.0
    %104 = vmatpush1.msra.mxu0 0.0
    %105 = vmatprep.subr.mxu0 0.0
    %106 = vmatpush1.msra.mxu0 0.0
    %107 = vmatprep.subr.mxu0 0.0
    %108 = vmatpush1.msra.mxu0 0.0
    %109 = vmatprep.subr.mxu0 0.0
    %110 = vmatpush1.msra.mxu0 0.0
    %111 = vmatprep.subr.mxu0 0.0
    %112 = vmatpush1.msra.mxu0 0.0
    %113 = vmatprep.subr.mxu0 0.0
    %114 = vmatpush1.msra.mxu0 0.0
    %115 = vmatprep.subr.mxu0 0.0
    %116 = vmatpush1.msra.mxu0 0.0
    %117 = vmatprep.mubr.f32.mxu0 0.0
    %118 = vmatmul.mubr.f32.gmra.mrb[0].mxu0 %v51
    %v119 = vpop.f32.mrb[0].mxu0
    %v120 = vadd.f32 0.0, %v119
    %v121 = vpop.f32.mrb[0].mxu0
    %122 = vdwg.mxu0
    %123 = vadd.xlane.f32.xlu0 %v120
    %v124 = vpop.xlane.xlu0 %123
    %v125 = vmul.f32 %v124, 0.0625
    %v126 = vmul.f32 %v120, %v120
    %127 = vadd.xlane.f32.xlu0 %v126
    %v128 = vpop.xlane.xlu0 %127
    %v129 = vmul.f32 %v128, 0.0625
    %v130 = vmul.f32 %v125, %v125
    %v131 = vsub.f32 %v129, %v130
    %v132 = vmax.f32 %v131, 0.0
    %v133 = vsub.f32 %v120, %v125
    %v134 = vadd.f32 %v132, 1e-05
    %v135 = vrsqrt.pop %v134
    %v136 = vmul.f32 %v133, %v135
    %v137 = vld [vmem:[%s2] sm:$0x1]
    %v139 = vlaneseq
    %v140 = vshrl.u32 %v139, 7
    %v141 = vsub.s32 0, %v140
    %v142 = vrot.slane %v137, %v141
    %v144 = vmul.f32 %v136, %v142
    %v145 = vld [vmem:[%s3] sm:$0x1]
    %v147 = vlaneseq
    %v148 = vshrl.u32 %v147, 7
    %v149 = vsub.s32 0, %v148
    %v150 = vrot.slane %v145, %v149
    %v152 = vadd.f32 %v144, %v150
    %v153 = vtanh.pop %v152
    %vm154 = vcmask 130048
    %155 = vst.msk [vmem:[#allocation7] sm:$0xff] %vm154, %v153
    // Predicated region
    $region26: #{tpu_custom_call.1} parent=1 // pred_check
      _
    $region27: #{tpu_custom_call.1} parent=1 // pred_check_branch
      %157 = sbr.rel (0) target = $region29
    $region28: #{tpu_custom_call.1} parent=1 // pred_region
      %s159 = ssub.s32 128, 128
      %160 = vsyncadd [#allocation4], %s159
      %s162 = sshll.u32 [#allocation7], 4
      %s163 = int_to_ptr.vmem [resolvable:$true] %s162
      %165 = dma.vmem_to_hbm [thread:$0]  %s163, 128, %s4, [#allocation4]
    $region29: #{tpu_custom_call.1} parent=1 // pred_fallthru
      _
    // Predicated region
    $region30: #{tpu_custom_call.1} parent=1 // pred_check
      _
    $region31: #{tpu_custom_call.1} parent=1 // pred_check_branch
      %167 = sbr.rel (0) target = $region33
    $region32: #{tpu_custom_call.1} parent=1 // pred_region
      %168 = dma.done [#allocation4], 128
    $region33: #{tpu_custom_call.1} parent=1 // pred_fallthru
      _
    %169 = vsyncpa [#allocation3], 1
    %170 = vsyncpa [#allocation6], 1
    %171 = vsyncpa [#allocation4], 1

</llo_original>
